<compile_context>
chip_gen: v6e
topology: v6e:2x2x1
jax: 0.10.0
libtpu: 0.0.40
codegen_flags: <defaults>
</compile_context>

<pallas_src>
import functools

import jax
import jax.numpy as jnp
from jax import lax
from jax.experimental import pallas as pl
from jax.experimental.pallas import tpu as pltpu

_MASK_MIN = -2.3819763e38

ATTN_TYPE_GLOBAL = 0
ATTN_TYPE_LOCAL_SLIDING = 1


def _pick_tile(dim, candidates):
    """Largest candidate tile that divides `dim`, else the full dim."""
    for c in candidates:
        if c <= dim and dim % c == 0:
            return c
    return dim


# --------------------------- tiled linear kernel ----------------------------

def _linear_kernel(x_ref, w_ref, o_ref, acc_ref):
    @pl.when(pl.program_id(2) == 0)
    def _init():
        acc_ref[...] = jnp.zeros_like(acc_ref)

    acc_ref[...] += jnp.dot(x_ref[...], w_ref[...],
                            preferred_element_type=jnp.float32)

    @pl.when(pl.program_id(2) == pl.num_programs(2) - 1)
    def _done():
        o_ref[...] = acc_ref[...].astype(o_ref.dtype)


def linear(x, w):
    """x: (M, K), w: (K, N) — bias-free Linear (Gemma Linear has no bias)."""
    M, K = x.shape
    K2, N = w.shape
    assert K == K2
    tm = _pick_tile(M, (256, 128, 64, 32, 16, 8))
    tn = _pick_tile(N, (512, 256, 128))
    tk = _pick_tile(K, (512, 256, 128))
    grid = (M // tm, N // tn, K // tk)

    itemsize = x.dtype.itemsize
    # explicit scoped-VMEM limit with headroom (v5e default is only ~16 MiB)
    ws = 2 * (tm * tk + tk * tn + tm * tn) * itemsize + tm * tn * 4
    vmem_limit = int(min(max(2 * ws + (8 << 20), 32 << 20), 100 << 20))

    cost = pl.CostEstimate(
        flops=2 * M * N * K,
        transcendentals=0,
        bytes_accessed=int((M * K * (N // tn) + K * N * (M // tm) + M * N)
                           * itemsize),
    )
    return pl.pallas_call(
        _linear_kernel,
        out_shape=jax.ShapeDtypeStruct((M, N), x.dtype),
        grid_spec=pltpu.PrefetchScalarGridSpec(
            num_scalar_prefetch=0,
            grid=grid,
            in_specs=[
                pl.BlockSpec((tm, tk), lambda i, j, k: (i, k)),
                pl.BlockSpec((tk, tn), lambda i, j, k: (k, j)),
            ],
            out_specs=pl.BlockSpec((tm, tn), lambda i, j, k: (i, j)),
            scratch_shapes=[pltpu.VMEM((tm, tn), jnp.float32)],
        ),
        compiler_params=pltpu.CompilerParams(
            dimension_semantics=("parallel", "parallel", "arbitrary"),
            vmem_limit_bytes=vmem_limit),
        cost_estimate=cost,
    )(x, w)


# ----------------- in-place KV cache scatter (index_copy_) ------------------

def _kv_scatter_kernel(idx_ref, new_ref, cache_hbm_ref, out_ref):
    del idx_ref, cache_hbm_ref        # cache comes in only to be aliased/donated
    out_ref[...] = new_ref[...].astype(out_ref.dtype)


def kv_cache_update(cache, new, indices):
    """Functional equivalent of torch `cache.index_copy_(1, indices, new)`.

    The cache buffer is aliased to the output (input_output_aliases), so only
    the T written rows are moved; untouched rows stay in place — no full-cache
    copy through HBM.
    """
    B, T, KVH, D = new.shape
    return pl.pallas_call(
        _kv_scatter_kernel,
        out_shape=jax.ShapeDtypeStruct(cache.shape, cache.dtype),
        grid_spec=pltpu.PrefetchScalarGridSpec(
            num_scalar_prefetch=1,
            grid=(B, T),
            in_specs=[
                pl.BlockSpec((1, 1, KVH, D), lambda b, t, idx: (b, t, 0, 0)),
                pl.BlockSpec(memory_space=pl.ANY),   # the cache itself (aliased)
            ],
            out_specs=pl.BlockSpec((1, 1, KVH, D),
                                   lambda b, t, idx: (b, idx[t], 0, 0)),
        ),
        input_output_aliases={2: 0},   # (indices, new, cache) -> cache aliases out
        compiler_params=pltpu.CompilerParams(
            dimension_semantics=("arbitrary", "arbitrary")),
    )(indices, new, cache)


# ------------------------ flash-style attention core ------------------------

def _attn_kernel(flags_ref, q_ref, k_ref, v_ref, mbits_ref, o_ref,
                 m_scr, l_scr, acc_scr, *,
                 scaling, softcap, num_kv_heads, q_per_kv, head_dim,
                 tq, tkv, nq_blocks, nkv_blocks, sliding_window_size):
    b = pl.program_id(0)
    qi = pl.program_id(1)
    ki = pl.program_id(2)
    D = head_dim
    G = q_per_kv
    KVH = num_kv_heads
    H = KVH * G

    @pl.when(ki == 0)
    def _init():
        m_scr[...] = jnp.full_like(m_scr, -jnp.inf)
        l_scr[...] = jnp.zeros_like(l_scr)
        acc_scr[...] = jnp.zeros_like(acc_scr)

    # Map the (possibly shrunk + shifted) ki grid index to the actual kv block.
    if sliding_window_size is not None:
        w = sliding_window_size
        start = jnp.maximum(0, (qi * tq - (w - 1)) // tkv)
        kb_raw = start + ki
        valid = kb_raw < nkv_blocks
        kb = jnp.minimum(kb_raw, nkv_blocks - 1)
        row_lo = qi * tq
        col_lo = kb * tkv
        intersects = ((col_lo <= row_lo + (tq - 1) + (w - 1)) &
                      (col_lo + (tkv - 1) >= row_lo - (w - 1)))
        process = valid & intersects
    else:
        kb = ki
        process = None

    # Skip blocks where no token attends (causal upper triangle / padding).
    flag_ok = flags_ref[(b * nq_blocks + qi) * nkv_blocks + kb] > 0
    process = flag_ok if process is None else (process & flag_ok)

    @pl.when(process)
    def _compute():
        # Expand the 1-byte attend bits into the additive mask tile, add the
        # sliding-window band in-kernel from iota (same index convention as
        # the torch triu/tril construction).
        bits = mbits_ref[0, 0]                                    # (tq, tkv) i8
        mask_tile = jnp.where(bits > 0, 0.0, _MASK_MIN).astype(jnp.float32)
        if sliding_window_size is not None:
            w = sliding_window_size
            row = qi * tq + lax.broadcasted_iota(jnp.int32, (tq, tkv), 0)
            col = kb * tkv + lax.broadcasted_iota(jnp.int32, (tq, tkv), 1)
            inside = (col >= row - (w - 1)) & (col <= row + (w - 1))
            mask_tile = jnp.where(inside, mask_tile, _MASK_MIN)
        # Same mask for every query head in a GQA group (rows are g-major).
        mask_big = jnp.tile(mask_tile, (G, 1))                    # (G*tq, tkv)

        k_all = k_ref[0]          # (tkv, KVH*D) — native cache layout
        v_all = v_ref[0]
        dn_qk = (((1,), (1,)), ((), ()))   # contract D on both sides, no k.T

        for kvh in range(KVH):
            # One (G*tq, D) MXU LHS per KV head: all its query heads at once.
            q = q_ref[0, 0, kvh]                              # (G*tq, D)
            k = k_all[:, kvh * D:(kvh + 1) * D]               # (tkv, D)
            v = v_all[:, kvh * D:(kvh + 1) * D]               # (tkv, D)

            s = lax.dot_general(q, k, dn_qk,
                                preferred_element_type=jnp.float32)
            if softcap is not None:
                # single fused scale (scaling/softcap), tanh, re-expand
                s = jnp.tanh(s * (scaling / softcap)) * softcap
            else:
                s = s * scaling
            s = s + mask_big

            r0 = kvh * G * tq
            r1 = r0 + G * tq
            m_prev = m_scr[r0:r1]                                  # (G*tq, 1)
            m_new = jnp.maximum(m_prev, jnp.max(s, axis=-1, keepdims=True))
            alpha = jnp.exp(m_prev - m_new)
            p = jnp.exp(s - m_new)
            l_scr[r0:r1] = alpha * l_scr[r0:r1] + jnp.sum(p, axis=-1,
                                                          keepdims=True)
            acc_scr[r0:r1] = alpha * acc_scr[r0:r1] + jnp.dot(
                p.astype(v.dtype), v, preferred_element_type=jnp.float32)
            m_scr[r0:r1] = m_new

    @pl.when(ki == pl.num_programs(2) - 1)
    def _done():
        l = l_scr[...]
        l = jnp.where(l > 0.0, l, 1.0)        # guard fully-masked rows (-> 0)
        approx = jnp.dtype(o_ref.dtype) != jnp.dtype(jnp.float32)
        inv_l = pl.reciprocal(l, approx=approx)                  # (H*tq, 1)
        out = acc_scr[...] * inv_l                               # (H*tq, D)
        # The HBM store is still one lane-dense (tq, H*D) slab per block; the
        # per-head writes below only rearrange inside the VMEM output block.
        for h in range(H):
            o_ref[0, :, h * D:(h + 1) * D] = out[h * tq:(h + 1) * tq].astype(
                o_ref.dtype)


def attention(xq, k_cache, v_cache, mask, *, scaling, softcap,
              num_queries_per_kv, sliding_window_size):
    """xq: (B,T,H,D) post-RoPE; caches: (B,S,KVH,D); mask: (B,1,T,S) additive."""
    B, T, H, D = xq.shape
    _, S, KVH, _ = k_cache.shape
    G = num_queries_per_kv
    assert H == KVH * G

    # tq prefers 16-multiples (bf16 sublane packing); tkv capped at 256 so the
    # double-buffered K/V blocks also fit the 64 MiB v7x VMEM with headroom.
    tq = _pick_tile(T, (256, 128, 64, 32, 16, 8))
    tkv = _pick_tile(S, (256, 128))
    nq = T // tq
    nkv = S // tkv

    if sliding_window_size is not None:
        band = tq + 2 * (sliding_window_size - 1)
        nk_grid = min(nkv, (band - 1) // tkv + 2)   # shrink the ki axis
    else:
        nk_grid = nkv

    # Q layout: (B, nq, KVH, G*tq, D) so each KV head's query group is one
    # contiguous MXU LHS — no in-kernel relayout (fused with RoPE by XLA).
    q_lay = (xq.reshape(B, nq, tq, KVH, G, D)
               .transpose(0, 1, 3, 4, 2, 5)
               .reshape(B, nq, KVH, G * tq, D))

    # KV cache stays in its native layout; only a free trailing-dim merge.
    k_flat = k_cache.reshape(B, S, KVH * D)
    v_flat = v_cache.reshape(B, S, KVH * D)

    # Compress the additive f32 mask to 1-byte attend bits (Gemma masks are
    # binary 0 / -2.38e38) and derive per-block "any token attends" flags.
    # TODO(synk): keep a bf16 additive path for non-binary masks (e.g. ALiBi).
    mask = jnp.broadcast_to(mask, (B, 1, T, S))
    bits = (mask > (_MASK_MIN * 0.5)).astype(jnp.int8)
    flags = (bits.reshape(B, nq, tq, nkv, tkv)
                 .max(axis=(2, 4))
                 .astype(jnp.int32)
                 .reshape(-1))                      # (B*nq*nkv,) scalar prefetch

    if sliding_window_size is not None:
        w = sliding_window_size

        def _kvb(qi, ki):
            start = jnp.maximum(0, (qi * tq - (w - 1)) // tkv)
            return jnp.minimum(start + ki, nkv - 1)

        kv_map = lambda b, qi, ki, f: (b, _kvb(qi, ki), 0)
        m_map = lambda b, qi, ki, f: (b, 0, qi, _kvb(qi, ki))
    else:
        kv_map = lambda b, qi, ki, f: (b, ki, 0)
        m_map = lambda b, qi, ki, f: (b, 0, qi, ki)
    q_map = lambda b, qi, ki, f: (b, qi, 0, 0, 0)
    o_map = lambda b, qi, ki, f: (b, qi, 0)

    kernel = functools.partial(
        _attn_kernel,
        scaling=scaling, softcap=softcap,
        num_kv_heads=KVH, q_per_kv=G, head_dim=D,
        tq=tq, tkv=tkv, nq_blocks=nq, nkv_blocks=nkv,
        sliding_window_size=sliding_window_size)

    q_item = xq.dtype.itemsize
    kv_item = k_cache.dtype.itemsize
    s_vis = nk_grid * tkv
    cost = pl.CostEstimate(
        flops=int(4 * B * H * T * s_vis * D),
        transcendentals=int(B * H * T * s_vis
                            * (2 if softcap is not None else 1)),
        bytes_accessed=int(2 * B * T * H * D * q_item            # q read + out
                           + 2 * B * nq * s_vis * KVH * D * kv_item  # k+v reads
                           + B * T * s_vis),                     # int8 mask
    )

    # Explicit scoped-VMEM limit with headroom (v5e default ~16 MiB is too
    # small at real Gemma sizes; v7x only has 64 MiB physical).
    ws = (2 * (KVH * G * tq * D * q_item
               + 2 * tkv * KVH * D * kv_item
               + tq * tkv
               + tq * H * D * q_item)
          + (2 * H * tq + H * tq * D) * 4)
    vmem_limit = int(min(max(2 * ws + (8 << 20), 32 << 20), 100 << 20))

    # TODO(synk): for B==1, T//tq==1 decode on v7x, promote the KV-head loop to
    # a leading "parallel" grid axis so both TensorCores are used.
    return pl.pallas_call(
        kernel,
        out_shape=jax.ShapeDtypeStruct((B, T, H * D), xq.dtype),
        grid_spec=pltpu.PrefetchScalarGridSpec(
            num_scalar_prefetch=1,
            grid=(B, nq, nk_grid),
            in_specs=[
                pl.BlockSpec((1, 1, KVH, G * tq, D), q_map),
                pl.BlockSpec((1, tkv, KVH * D), kv_map),
                pl.BlockSpec((1, tkv, KVH * D), kv_map),
                pl.BlockSpec((1, 1, tq, tkv), m_map),
            ],
            out_specs=pl.BlockSpec((1, tq, H * D), o_map),
            scratch_shapes=[
                pltpu.VMEM((H * tq, 1), jnp.float32),   # running max m
                pltpu.VMEM((H * tq, 1), jnp.float32),   # running sum l
                pltpu.VMEM((H * tq, D), jnp.float32),   # output accumulator
            ],
        ),
        compiler_params=pltpu.CompilerParams(
            dimension_semantics=("parallel", "parallel", "arbitrary"),
            vmem_limit_bytes=vmem_limit),
        cost_estimate=cost,
    )(flags, q_lay, k_flat, v_flat, bits)


# ------------------------------ JAX glue ops --------------------------------

def apply_rotary_emb(x, cos, sin):
    """x: (B, T, H, D); cos/sin: (T, D//2). Split-half rotary (Gemma style)."""
    # TODO(synk): fuse RoPE into the attention-kernel prologue / QKV epilogue
    # to avoid an extra HBM round trip over the activations.
    x1, x2 = jnp.split(x.astype(jnp.float32), 2, axis=-1)
    c = cos[None, :, None, :]
    s = sin[None, :, None, :]
    real = x1 * c - x2 * s
    imag = x1 * s + x2 * c
    return jnp.concatenate([real, imag], axis=-1).astype(x.dtype)


class GemmaAttentionPallas:
    def __init__(self, hidden_size, num_heads, num_kv_heads,
                 attn_logit_softcapping, query_pre_attn_scalar, head_dim,
                 attn_type, w_qkv, w_o, sliding_window_size=None):
        assert num_heads % num_kv_heads == 0
        self.num_heads = num_heads
        self.num_kv_heads = num_kv_heads
        self.num_queries_per_kv = num_heads // num_kv_heads
        self.hidden_size = hidden_size
        self.head_dim = head_dim
        self.q_size = num_heads * head_dim
        self.kv_size = num_kv_heads * head_dim
        if query_pre_attn_scalar is not None:
            self.scaling = query_pre_attn_scalar ** (-0.5)
        else:
            self.scaling = head_dim ** (-0.5)
        self.w_qkv = w_qkv   # (hidden, q_size + 2*kv_size)  (W^T of torch Linear)
        self.w_o = w_o       # (q_size, hidden)
        self.attn_type = attn_type
        self.sliding_window_size = sliding_window_size
        self.attn_logit_softcapping = attn_logit_softcapping

    def __call__(self, hidden_states, cos, sin, kv_write_indices, kv_cache, mask):
        B, T, _ = hidden_states.shape
        H, KVH, D = self.num_heads, self.num_kv_heads, self.head_dim

        # QKV projection (tiled Pallas matmul).
        qkv = linear(hidden_states.reshape(B * T, self.hidden_size), self.w_qkv)
        qkv = qkv.reshape(B, T, self.q_size + 2 * self.kv_size)
        xq = qkv[..., :self.q_size].reshape(B, T, H, D)
        xk = qkv[..., self.q_size:self.q_size + self.kv_size].reshape(B, T, KVH, D)
        xv = qkv[..., self.q_size + self.kv_size:].reshape(B, T, KVH, D)

        xq = apply_rotary_emb(xq, cos, sin)
        xk = apply_rotary_emb(xk, cos, sin)

        # KV cache update: in-place Pallas scatter (aliased buffers), writing
        # only the T new rows (torch index_copy_ semantics).
        k_cache, v_cache = kv_cache
        if k_cache.dtype != xk.dtype:
            k_cache = k_cache.astype(xk.dtype)
            v_cache = v_cache.astype(xv.dtype)
        idx = kv_write_indices.astype(jnp.int32)
        k_cache = kv_cache_update(k_cache, xk.astype(k_cache.dtype), idx)
        v_cache = kv_cache_update(v_cache, xv.astype(v_cache.dtype), idx)

        sliding = (self.sliding_window_size
                   if (self.attn_type == ATTN_TYPE_LOCAL_SLIDING
                       and self.sliding_window_size is not None) else None)

        out = attention(
            xq, k_cache, v_cache, mask,
            scaling=self.scaling,
            softcap=self.attn_logit_softcapping,
            num_queries_per_kv=self.num_queries_per_kv,
            sliding_window_size=sliding)

        out = linear(out.reshape(B * T, H * D), self.w_o)
        return out.reshape(B, T, self.hidden_size), (k_cache, v_cache)


# ------------------------- pure-JAX reference check -------------------------

def reference_forward(attn: GemmaAttentionPallas, hidden_states, cos, sin,
                      kv_write_indices, kv_cache, mask):
    B, T, _ = hidden_states.shape
    H, KVH, D = attn.num_heads, attn.num_kv_heads, attn.head_dim
    qkv = hidden_states.reshape(B * T, -1) @ attn.w_qkv
    qkv = qkv.reshape(B, T, -1)
    xq = qkv[..., :attn.q_size].reshape(B, T, H, D)
    xk = qkv[..., attn.q_size:attn.q_size + attn.kv_size].reshape(B, T, KVH, D)
    xv = qkv[..., attn.q_size + attn.kv_size:].reshape(B, T, KVH, D)
    xq = apply_rotary_emb(xq, cos, sin)
    xk = apply_rotary_emb(xk, cos, sin)
    k_cache, v_cache = kv_cache
    k_cache = k_cache.at[:, kv_write_indices].set(xk.astype(k_cache.dtype))
    v_cache = v_cache.at[:, kv_write_indices].set(xv.astype(v_cache.dtype))
    key = jnp.repeat(k_cache, attn.num_queries_per_kv, axis=2)
    val = jnp.repeat(v_cache, attn.num_queries_per_kv, axis=2)
    q = jnp.transpose(xq, (0, 2, 1, 3)) * attn.scaling
    kt = jnp.transpose(key, (0, 2, 1, 3))
    vt = jnp.transpose(val, (0, 2, 1, 3))
    scores = jnp.einsum('bhtd,bhsd->bhts', q, kt)
    if (attn.attn_type == ATTN_TYPE_LOCAL_SLIDING
            and attn.sliding_window_size is not None):
        Tm, Sm = mask.shape[-2], mask.shape[-1]
        i = jnp.arange(Tm)[:, None]
        j = jnp.arange(Sm)[None, :]
        w = attn.sliding_window_size
        sliding = (j >= i - w + 1) & (j <= i + w - 1)
        mask = jnp.where(sliding, mask, jnp.float32(_MASK_MIN))
    if attn.attn_logit_softcapping is not None:
        scores = jnp.tanh(scores / attn.attn_logit_softcapping)
        scores = scores * attn.attn_logit_softcapping
    scores = scores + mask
    scores = jax.nn.softmax(scores.astype(jnp.float32), axis=-1)
    out = jnp.einsum('bhts,bhsd->bhtd', scores, vt)
    out = jnp.transpose(out, (0, 2, 1, 3)).reshape(B * T, H * D)
    return (out @ attn.w_o).reshape(B, T, attn.hidden_size)


# ---------------------------------- main -------------------------------------

if __name__ == "__main__":
    B, T, hidden = 2, 8, 32
    num_heads, num_kv_heads, head_dim = 4, 2, 16
    max_seq = 512   # 2 kv blocks so block-skipping + online softmax are exercised
    q_size = num_heads * head_dim
    kv_size = num_kv_heads * head_dim

    key = jax.random.PRNGKey(0)
    k1, k2, k3 = jax.random.split(key, 3)
    w_qkv = (jax.random.normal(k1, (hidden, q_size + 2 * kv_size), jnp.float32)
             * 0.05)
    w_o = jax.random.normal(k2, (q_size, hidden), jnp.float32) * 0.05
    hidden_states = jax.random.normal(k3, (B, T, hidden), jnp.float32)

    kv_write_indices = jnp.arange(T, dtype=jnp.int32)

    # rotary freqs (cos/sin form of freqs_cis), theta = 10000
    positions = kv_write_indices.astype(jnp.float32)
    inv_freq = 1.0 / (10000.0 ** (jnp.arange(0, head_dim, 2, dtype=jnp.float32)
                                  / head_dim))
    freqs = positions[:, None] * inv_freq[None, :]
    cos, sin = jnp.cos(freqs), jnp.sin(freqs)

    # causal mask over the cache: query i may attend to cache positions <= i
    col = jnp.arange(max_seq)[None, :]
    row = kv_write_indices[:, None]
    base_mask = jnp.where(col <= row, 0.0, _MASK_MIN).astype(jnp.float32)
    mask = jnp.broadcast_to(base_mask[None, None], (B, 1, T, max_seq))

    attn_local = GemmaAttentionPallas(
        hidden_size=hidden, num_heads=num_heads, num_kv_heads=num_kv_heads,
        attn_logit_softcapping=50.0, query_pre_attn_scalar=None,
        head_dim=head_dim, attn_type=ATTN_TYPE_LOCAL_SLIDING,
        w_qkv=w_qkv, w_o=w_o, sliding_window_size=4)
    attn_global = GemmaAttentionPallas(
        hidden_size=hidden, num_heads=num_heads, num_kv_heads=num_kv_heads,
        attn_logit_softcapping=None, query_pre_attn_scalar=32,
        head_dim=head_dim, attn_type=ATTN_TYPE_GLOBAL,
        w_qkv=w_qkv, w_o=w_o, sliding_window_size=None)

    def make_cache():
        return (jnp.zeros((B, max_seq, num_kv_heads, head_dim), jnp.float32),
                jnp.zeros((B, max_seq, num_kv_heads, head_dim), jnp.float32))

    # references first (the Pallas path donates/aliases its cache buffers)
    ref_local = reference_forward(attn_local, hidden_states, cos, sin,
                                  kv_write_indices, make_cache(), mask)
    ref_global = reference_forward(attn_global, hidden_states, cos, sin,
                                   kv_write_indices, make_cache(), mask)

    out_local, _ = attn_local(hidden_states, cos, sin, kv_write_indices,
                              make_cache(), mask)
    out_global, _ = attn_global(hidden_states, cos, sin, kv_write_indices,
                                make_cache(), mask)
    out_local = jax.block_until_ready(out_local)
    out_global = jax.block_until_ready(out_global)

    assert jnp.allclose(out_local, ref_local, rtol=5e-4, atol=5e-5), \
        "mismatch vs reference (local sliding)"
    assert jnp.allclose(out_global, ref_global, rtol=5e-4, atol=5e-5), \
        "mismatch vs reference (global)"

    print("KERNEL_OK")
</pallas_src>

<mosaic_0001>
module attributes {stable_mosaic.version = 11 : i64} {
  func.func @_linear_kernel(%arg0: i32, %arg1: i32, %arg2: i32, %arg3: memref<16x32xf32, #tpu.memory_space<vmem>>, %arg4: memref<32x128xf32, #tpu.memory_space<vmem>>, %arg5: memref<16x128xf32, #tpu.memory_space<vmem>>, %arg6: memref<16x128xf32, #tpu.memory_space<vmem>>) attributes {dimension_semantics = [#tpu.dimension_semantics<parallel>, #tpu.dimension_semantics<parallel>, #tpu.dimension_semantics<arbitrary>], iteration_bounds = array<i64: 1, 1, 1>, scalar_prefetch = 0 : i64, scratch_operands = 1 : i64, tpu.core_type = #tpu.core_type<tc>, window_params = [{transform_indices = @transform_0, window_bounds = array<i64: 16, 32>}, {transform_indices = @transform_1, window_bounds = array<i64: 32, 128>}, {transform_indices = @transform_2, window_bounds = array<i64: 16, 128>}]} {
    %c0_i32 = arith.constant 0 : i32
    %0 = arith.cmpi eq, %arg2, %c0_i32 : i32
    %1 = arith.extui %0 : i1 to i32
    %c0_i32_0 = arith.constant 0 : i32
    %2 = arith.cmpi ne, %1, %c0_i32_0 : i32
    scf.if %2 {
      %cst_10 = arith.constant 0.000000e+00 : f32
      %12 = vector.broadcast %cst_10 : f32 to vector<16x128xf32>
      %c0_11 = arith.constant 0 : index
      %c0_12 = arith.constant 0 : index
      %13 = vector.load %arg6[%c0_11, %c0_12] : memref<16x128xf32, #tpu.memory_space<vmem>>, vector<16x128xf32>
      tpu.vector_store %arg6[%c0_11, %c0_12], %12 {strides = array<i32>} : memref<16x128xf32, #tpu.memory_space<vmem>>, vector<16x128xf32>,
    } else {
    }
    %c0 = arith.constant 0 : index
    %c0_1 = arith.constant 0 : index
    %3 = vector.load %arg6[%c0, %c0_1] : memref<16x128xf32, #tpu.memory_space<vmem>>, vector<16x128xf32>
    %c0_2 = arith.constant 0 : index
    %c0_3 = arith.constant 0 : index
    %4 = vector.load %arg3[%c0_2, %c0_3] : memref<16x32xf32, #tpu.memory_space<vmem>>, vector<16x32xf32>
    %c0_4 = arith.constant 0 : index
    %c0_5 = arith.constant 0 : index
    %5 = vector.load %arg4[%c0_4, %c0_5] : memref<32x128xf32, #tpu.memory_space<vmem>>, vector<32x128xf32>
    %cst = arith.constant dense<0.000000e+00> : vector<16x128xf32>
    %6 = tpu.matmul %4, %5, %cst {dimension_numbers = #tpu.dot_dimension_numbers<[1], [0], [0], [1], [0, 0, 1, 1], [], []>} : vector<16x32xf32>, vector<32x128xf32>, vector<16x128xf32> -> vector<16x128xf32>
    %7 = arith.addf %3, %6 : vector<16x128xf32>
    %c0_6 = arith.constant 0 : index
    %c0_7 = arith.constant 0 : index
    %8 = vector.load %arg6[%c0_6, %c0_7] : memref<16x128xf32, #tpu.memory_space<vmem>>, vector<16x128xf32>
    tpu.vector_store %arg6[%c0_6, %c0_7], %7 {strides = array<i32>} : memref<16x128xf32, #tpu.memory_space<vmem>>, vector<16x128xf32>,
    %c0_i32_8 = arith.constant 0 : i32
    %9 = arith.cmpi eq, %arg2, %c0_i32_8 : i32
    %10 = arith.extui %9 : i1 to i32
    %c0_i32_9 = arith.constant 0 : i32
    %11 = arith.cmpi ne, %10, %c0_i32_9 : i32
    scf.if %11 {
      %c0_10 = arith.constant 0 : index
      %c0_11 = arith.constant 0 : index
      %12 = vector.load %arg6[%c0_10, %c0_11] : memref<16x128xf32, #tpu.memory_space<vmem>>, vector<16x128xf32>
      %c0_12 = arith.constant 0 : index
      %c0_13 = arith.constant 0 : index
      %13 = vector.load %arg5[%c0_12, %c0_13] : memref<16x128xf32, #tpu.memory_space<vmem>>, vector<16x128xf32>
      tpu.vector_store %arg5[%c0_12, %c0_13], %12 {strides = array<i32>} : memref<16x128xf32, #tpu.memory_space<vmem>>, vector<16x128xf32>,
    } else {
    }
    return
  }
  func.func @transform_0(%arg0: i32, %arg1: i32, %arg2: i32) -> (i32, i32) {
    %c0_i32 = arith.constant 0 : i32
    return %arg0, %arg2 : i32, i32
  }
  func.func @transform_1(%arg0: i32, %arg1: i32, %arg2: i32) -> (i32, i32) {
    %c0_i32 = arith.constant 0 : i32
    return %arg2, %arg1 : i32, i32
  }
  func.func @transform_2(%arg0: i32, %arg1: i32, %arg2: i32) -> (i32, i32) {
    %c0_i32 = arith.constant 0 : i32
    return %arg0, %arg1 : i32, i32
  }
}

</mosaic_0001>

<llo_original>
// kernel: tpu_custom_call.1
$region0: #{tpu_custom_call.1}
  #allocation0 [shape = 'u32[]', space=smem, size = 0x4, offset = 0x4, fixed_abs, tag = 'smem constant byte address 0x4 - core index']
  #allocation1 [shape = 'u32[144,128]{1,0:T(1,128)}', space=vmem, size = 0x12000, scoped, tag = 'internal scratch']
  #allocation2 [shape = 'f32[16,128]{1,0:T(8,128)}', space=vmem, size = 0x2000, scoped, tag = 'scratch operand']
  %s0 = inlined_call_operand.hbm [shape: f32[16,32], index: 0, kind: input, shape index: {}]
  %s1 = inlined_call_operand.hbm [shape: f32[32,128], index: 1, kind: input, shape index: {}]
  %s2 = inlined_call_operand.hbm [shape: f32[16,128], index: 2, kind: output, shape index: {}]
  %s3 = sld [smem:[#allocation0]]
  $region34: #{tpu_custom_call.1} parent=0
    _
  %s5 = ssub.s32 1, %s3
  %s6 = scalar_select 0, %s5, %s3
  $region1: #{tpu_custom_call.1} parent=0
    #allocation3 [shape = 'u8[8192]{0}', space=vmem, size = 0x2000, scoped, tag = 'input window, operand 0, single buffered']
    #allocation4 [shape = 's32[1]{0}', space=sflag, size = 0x4, scoped, tag = 'scoped memory for tpu_custom_call.1']
    #allocation5 [shape = 's32[1]{0}', space=sflag, size = 0x4, scoped, tag = 'scoped memory for tpu_custom_call.1']
    #allocation6 [shape = 'u8[16384]{0}', space=vmem, size = 0x4000, scoped, tag = 'input window, operand 1, single buffered']
    #allocation7 [shape = 's32[1]{0}', space=sflag, size = 0x4, scoped, tag = 'scoped memory for tpu_custom_call.1']
    #allocation8 [shape = 'u8[8192]{0}', space=vmem, size = 0x2000, scoped, tag = 'output window, operand 0, single buffered']
    %7 = vsyncpa [#allocation4], 0
    %8 = vsyncpa [#allocation7], 0
    %9 = vsyncpa [#allocation5], 0
    // Predicated region
    $region2: #{tpu_custom_call.1} parent=1 // pred_check
      _
    $region3: #{tpu_custom_call.1} parent=1 // pred_check_branch
      %11 = sbr.rel (0) target = $region5
    $region4: #{tpu_custom_call.1} parent=1 // pred_region
      %s13 = ssub.s32 256, 256
      %14 = vsyncadd [#allocation4], %s13
      %s15 = sshll.u32 [#allocation3], 4
      %s16 = int_to_ptr.vmem [resolvable:$true] %s15
      %21 = dma.hbm_to_vmem [thread:$0]  %s0, 256, %s16, [#allocation4], 128, 128, 8
    $region5: #{tpu_custom_call.1} parent=1 // pred_fallthru
      _
    // Predicated region
    $region6: #{tpu_custom_call.1} parent=1 // pred_check
      _
    $region7: #{tpu_custom_call.1} parent=1 // pred_check_branch
      %23 = sbr.rel (0) target = $region9
    $region8: #{tpu_custom_call.1} parent=1 // pred_region
      %s25 = ssub.s32 512, 512
      %26 = vsyncadd [#allocation7], %s25
      %s27 = sshll.u32 [#allocation6], 4
      %s28 = int_to_ptr.vmem [resolvable:$true] %s27
      %33 = dma.hbm_to_vmem [thread:$0]  %s1, 512, %s28, [#allocation7], 128, 128, 8
    $region9: #{tpu_custom_call.1} parent=1 // pred_fallthru
      _
    // Predicated region
    $region10: #{tpu_custom_call.1} parent=1 // pred_check
      _
    $region11: #{tpu_custom_call.1} parent=1 // pred_check_branch
      %35 = sbr.rel (0) target = $region13
    $region12: #{tpu_custom_call.1} parent=1 // pred_region
      %36 = dma.done [#allocation4], 256
    $region13: #{tpu_custom_call.1} parent=1 // pred_fallthru
      _
    // Predicated region
    $region14: #{tpu_custom_call.1} parent=1 // pred_check
      _
    $region15: #{tpu_custom_call.1} parent=1 // pred_check_branch
      %38 = sbr.rel (0) target = $region17
    $region16: #{tpu_custom_call.1} parent=1 // pred_region
      %39 = dma.done [#allocation7], 512
    $region17: #{tpu_custom_call.1} parent=1 // pred_fallthru
      _
    %p40 = scmp.eq.s32.totalorder 0, 0
    // Predicated region
    $region18: #{tpu_custom_call.1} parent=1 // pred_check
      %p41 = pneg %p40
    $region19: #{tpu_custom_call.1} parent=1 // pred_check_branch
      %43 = sbr.rel (%p41) target = $region21
    $region20: #{tpu_custom_call.1} parent=1 // pred_region
      %44 = vst [vmem:[#allocation2] sm:$0xff] 0.0
      %45 = vst [vmem:[#allocation2 + $0x8] sm:$0xff] 0.0
    $region21: #{tpu_custom_call.1} parent=1 // pred_fallthru
      _
    %v46 = vld [vmem:[#allocation2] sm:$0xff]
    %v47 = vld [vmem:[#allocation2 + $0x8] sm:$0xff]
    %v48 = vld [vmem:[#allocation3] sm:$0xff]
    %v49 = vld [vmem:[#allocation3 + $0x8] sm:$0xff]
    %v50 = vld [vmem:[#allocation6] sm:$0xff]
    %v51 = vld [vmem:[#allocation6 + $0x8] sm:$0xff]
    %v52 = vld [vmem:[#allocation6 + $0x10] sm:$0xff]
    %v53 = vld [vmem:[#allocation6 + $0x18] sm:$0xff]
    %vm54 = vcmask 261120
    %v56 = vsel %vm54, %v48, 0
    %v59 = vsel %vm54, %v49, 0
    %61 = vmatprep.subr.mxu0 0.0
    %62 = vmatpush1.msra.mxu0 0.0
    %63 = vmatprep.subr.mxu0 0.0
    %64 = vmatpush1.msra.mxu0 0.0
    %65 = vmatprep.subr.mxu0 0.0
    %66 = vmatpush1.msra.mxu0 0.0
    %67 = vmatprep.subr.mxu0 0.0
    %68 = vmatpush1.msra.mxu0 0.0
    %69 = vmatprep.subr.mxu0 0.0
    %70 = vmatpush1.msra.mxu0 0.0
    %71 = vmatprep.subr.mxu0 0.0
    %72 = vmatpush1.msra.mxu0 0.0
    %73 = vmatprep.subr.mxu0 0.0
    %74 = vmatpush1.msra.mxu0 0.0
    %75 = vmatprep.subr.mxu0 0.0
    %76 = vmatpush1.msra.mxu0 0.0
    %77 = vmatprep.subr.mxu0 0.0
    %78 = vmatpush1.msra.mxu0 0.0
    %79 = vmatprep.subr.mxu0 0.0
    %80 = vmatpush1.msra.mxu0 0.0
    %81 = vmatprep.subr.mxu0 0.0
    %82 = vmatpush1.msra.mxu0 0.0
    %83 = vmatprep.subr.mxu0 0.0
    %84 = vmatpush1.msra.mxu0 0.0
    %85 = vmatprep.subr.mxu0 0.0
    %86 = vmatpush1.msra.mxu0 %v53
    %87 = vmatprep.subr.mxu0 0.0
    %88 = vmatpush1.msra.mxu0 %v52
    %89 = vmatprep.subr.mxu0 0.0
    %90 = vmatpush1.msra.mxu0 %v51
    %91 = vmatprep.subr.mxu0 0.0
    %92 = vmatpush1.msra.mxu0 %v50
    %93 = vmatprep.subr.mxu0 0.0
    %94 = vmatpush2.msra.mxu0 0.0
    %95 = vmatprep.subr.mxu0 0.0
    %96 = vmatpush2.msra.mxu0 0.0
    %97 = vmatprep.subr.mxu0 0.0
    %98 = vmatpush2.msra.mxu0 0.0
    %99 = vmatprep.subr.mxu0 0.0
    %100 = vmatpush2.msra.mxu0 0.0
    %101 = vmatprep.subr.mxu0 0.0
    %102 = vmatpush2.msra.mxu0 0.0
    %103 = vmatprep.subr.mxu0 0.0
    %104 = vmatpush2.msra.mxu0 0.0
    %105 = vmatprep.subr.mxu0 0.0
    %106 = vmatpush2.msra.mxu0 0.0
    %107 = vmatprep.subr.mxu0 0.0
    %108 = vmatpush2.msra.mxu0 0.0
    %109 = vmatprep.subr.mxu0 0.0
    %110 = vmatpush2.msra.mxu0 0.0
    %111 = vmatprep.subr.mxu0 0.0
    %112 = vmatpush2.msra.mxu0 0.0
    %113 = vmatprep.subr.mxu0 0.0
    %114 = vmatpush2.msra.mxu0 0.0
    %115 = vmatprep.subr.mxu0 0.0
    %116 = vmatpush2.msra.mxu0 0.0
    %117 = vmatprep.subr.mxu0 0.0
    %118 = vmatpush2.msra.mxu0 0.0
    %119 = vmatprep.subr.mxu0 0.0
    %120 = vmatpush2.msra.mxu0 0.0
    %121 = vmatprep.subr.mxu0 0.0
    %122 = vmatpush2.msra.mxu0 0.0
    %123 = vmatprep.subr.mxu0 0.0
    %124 = vmatpush2.msra.mxu0 0.0
    %125 = vmatprep.mubr.f32.mxu0 0.0
    %126 = vmatmul.mubr.f32.gmra.mxu0 %v56
    %v127 = vpop.f32.mrf.mxu0
    %v128 = vadd.f32 0.0, %v127
    %v129 = vpop.f32.mrf.mxu0
    %130 = vmatprep.mubr.f32.mxu0 0.0
    %131 = vmatmul.mubr.f32.gmra.mxu0 %v59
    %v132 = vpop.f32.mrf.mxu0
    %v133 = vadd.f32 0.0, %v132
    %v134 = vpop.f32.mrf.mxu0
    %135 = vdwg.mxu0
    %v136 = vadd.f32 %v46, %v128
    %v137 = vadd.f32 %v47, %v133
    %138 = vst [vmem:[#allocation2] sm:$0xff] %v136
    %139 = vst [vmem:[#allocation2 + $0x8] sm:$0xff] %v137
    // Predicated region
    $region22: #{tpu_custom_call.1} parent=1 // pred_check
      %p140 = pneg %p40
    $region23: #{tpu_custom_call.1} parent=1 // pred_check_branch
      %142 = sbr.rel (%p140) target = $region25
    $region24: #{tpu_custom_call.1} parent=1 // pred_region
      %v143 = vld [vmem:[#allocation2] sm:$0xff]
      %v144 = vld [vmem:[#allocation2 + $0x8] sm:$0xff]
      %145 = vst [vmem:[#allocation8] sm:$0xff] %v143
      %146 = vst [vmem:[#allocation8 + $0x8] sm:$0xff] %v144
    $region25: #{tpu_custom_call.1} parent=1 // pred_fallthru
      _
    // Predicated region
    $region26: #{tpu_custom_call.1} parent=1 // pred_check
      _
    $region27: #{tpu_custom_call.1} parent=1 // pred_check_branch
      %148 = sbr.rel (0) target = $region29
    $region28: #{tpu_custom_call.1} parent=1 // pred_region
      %s150 = ssub.s32 256, 256
      %151 = vsyncadd [#allocation5], %s150
      %s152 = sshll.u32 [#allocation8], 4
      %s153 = int_to_ptr.vmem [resolvable:$true] %s152
      %158 = dma.vmem_to_hbm [thread:$0]  %s153, 256, %s2, [#allocation5], 128, 128, 8
    $region29: #{tpu_custom_call.1} parent=1 // pred_fallthru
      _
    // Predicated region
    $region30: #{tpu_custom_call.1} parent=1 // pred_check
      _
    $region31: #{tpu_custom_call.1} parent=1 // pred_check_branch
      %160 = sbr.rel (0) target = $region33
    $region32: #{tpu_custom_call.1} parent=1 // pred_region
      %161 = dma.done [#allocation5], 256
    $region33: #{tpu_custom_call.1} parent=1 // pred_fallthru
      _
    %162 = vsyncpa [#allocation4], 1
    %163 = vsyncpa [#allocation7], 1
    %164 = vsyncpa [#allocation5], 1

</llo_original>
